<compile_context>
chip_gen: v6e
topology: v6e:2x2x1
jax: 0.10.0
libtpu: 0.0.40
codegen_flags: <defaults>
</compile_context>

<pallas_src>
import functools

import jax
import jax.numpy as jnp
from jax import lax
from jax.experimental import pallas as pl
from jax.experimental.pallas import tpu as pltpu


def _round_up(x, m):
    return (x + m - 1) // m * m


def _conv2d_kernel(x_ref, t_ref, b_ref, o_ref, *, kh_sz, ho_pad, wcin, nb):
    """One batch-block per grid step.

    x_ref: (nb, H_pad, W*Cin)            bf16, NHWC with (W, Cin) on lanes
    t_ref: (KH*W*Cin, lanes)             bf16, banded (Toeplitz) conv weights
    b_ref: (1, lanes)                    f32, bias tiled along w_out (zero-padded)
    o_ref: (nb, Ho_pad, lanes)           f32, lanes = round_up(Wo*Cout, 128)
    """
    for i in range(nb):                               # unrolled tiny batch loop
        x_i = x_ref[i]                                # [H_pad, W*Cin]  bf16
        acc = jnp.zeros((ho_pad, o_ref.shape[-1]), jnp.float32)
        for kh in range(kh_sz):                       # KH accumulated MXU dots
            acc += jnp.dot(
                x_i[kh:kh + ho_pad, :],               # cheap sublane shift
                t_ref[kh * wcin:(kh + 1) * wcin, :],  # free static ref slice
                preferred_element_type=jnp.float32)
        o_ref[i] = acc + b_ref[...]                   # full (16,128) tile store


def _banded_weights(weight, w_dim):
    """Build T: [KH*W*Cin, Wo*Cout] such that for
    X[h_out, kh*W*Cin + w*Cin + cin] = x[h_out + kh, w, cin],
    (X @ T)[h_out, w_out*Cout + cout] = conv(x, weight)[cout, h_out, w_out].
    """
    cout, cin, kh_sz, kw_sz = weight.shape
    wo = w_dim - kw_sz + 1
    w_hwio = jnp.transpose(weight, (2, 3, 1, 0))             # [KH, KW, Cin, Cout]
    kw_rel = jnp.arange(w_dim)[:, None] - jnp.arange(wo)[None, :]   # [W, Wo]
    valid = (kw_rel >= 0) & (kw_rel < kw_sz)
    kw_safe = jnp.clip(kw_rel, 0, kw_sz - 1)
    band = w_hwio[:, kw_safe, :, :]                          # [KH, W, Wo, Cin, Cout]
    band = band * valid[None, :, :, None, None].astype(band.dtype)
    band = jnp.transpose(band, (0, 1, 3, 2, 4))              # [KH, W, Cin, Wo, Cout]
    return band.reshape(kh_sz * w_dim * cin, wo * cout)


def conv2d_pallas(x_nchw, weight, bias, *, n_blocks=1):
    """Valid 2D convolution matching nn.Conv2d(..., kernel_size=K).

    x_nchw : [N, Cin, H, W]
    weight : [Cout, Cin, KH, KW]   (PyTorch layout)
    bias   : [Cout]
    n_blocks: grid steps (1 for v5e/v6e; 2 on v7x to use both TensorCores)
    returns: [N, Cout, Ho, Wo]  with Ho = H-KH+1, Wo = W-KW+1
    """
    n, cin, h, w = x_nchw.shape
    cout, cin_w, kh_sz, kw_sz = weight.shape
    assert cin == cin_w
    assert n % n_blocks == 0
    ho, wo = h - kh_sz + 1, w - kw_sz + 1
    wcin = w * cin

    # Tile-aligned padded extents.
    ho_pad = _round_up(ho, 16)               # exact (16,128) output tiles
    h_pad = ho_pad + kh_sz - 1               # rows the kernel's kh-shifts read
    lanes = _round_up(wo * cout, 128)        # lane-dense unmasked stores

    # --- layout glue on tiny tensors (run this whole wrapper under jit so the
    # transposes / Toeplitz build fuse; keep NHWC end-to-end in a real model) ---
    x_flat = jnp.transpose(x_nchw, (0, 2, 3, 1)).reshape(n, h, wcin)
    x_flat = jnp.pad(x_flat, ((0, 0), (0, h_pad - h), (0, 0))).astype(jnp.bfloat16)

    t_mat = _banded_weights(weight, w)                                  # [KH*W*Cin, Wo*Cout]
    t_mat = jnp.pad(t_mat, ((0, 0), (0, lanes - wo * cout))).astype(jnp.bfloat16)
    b_row = jnp.pad(jnp.tile(bias, wo), (0, lanes - wo * cout))
    b_row = b_row.reshape(1, lanes).astype(jnp.float32)

    nb = n // n_blocks
    kernel = functools.partial(_conv2d_kernel, kh_sz=kh_sz, ho_pad=ho_pad,
                               wcin=wcin, nb=nb)

    cost = pl.CostEstimate(
        flops=2 * n * ho_pad * (kh_sz * wcin) * lanes,
        transcendentals=0,
        bytes_accessed=(x_flat.size * 2 + t_mat.size * 2
                        + b_row.size * 4 + n * ho_pad * lanes * 4),
    )

    y_pad = pl.pallas_call(
        kernel,
        out_shape=jax.ShapeDtypeStruct((n, ho_pad, lanes), jnp.float32),
        grid_spec=pltpu.PrefetchScalarGridSpec(
            num_scalar_prefetch=0,
            grid=(n_blocks,),
            in_specs=[
                pl.BlockSpec((nb, h_pad, wcin), lambda g: (g, 0, 0)),
                pl.BlockSpec((kh_sz * wcin, lanes), lambda g: (0, 0)),
                pl.BlockSpec((1, lanes), lambda g: (0, 0)),
            ],
            out_specs=pl.BlockSpec((nb, ho_pad, lanes), lambda g: (g, 0, 0)),
        ),
        compiler_params=pltpu.CompilerParams(
            dimension_semantics=("parallel",),
        ),
        cost_estimate=cost,
    )(x_flat, t_mat, b_row)

    # [N, Ho_pad, lanes] -> [N, Cout, Ho, Wo] (NCHW, matching PyTorch)
    y = y_pad[:, :ho, :wo * cout].reshape(n, ho, wo, cout)
    return jnp.transpose(y, (0, 3, 1, 2))


if __name__ == "__main__":
    # Module config (spatial_dims=2): Conv2d(in=4, out=8, kernel_size=3)
    N, CIN, H, W = 2, 4, 16, 16
    COUT, K = 8, 3

    key = jax.random.PRNGKey(0)
    k_x, k_w, k_b = jax.random.split(key, 3)

    x = jax.random.normal(k_x, (N, CIN, H, W), dtype=jnp.float32)
    # Deterministic parameter init (Kaiming-uniform-like bound, as in nn.Conv2d)
    fan_in = CIN * K * K
    bound = 1.0 / jnp.sqrt(fan_in)
    weight = jax.random.uniform(k_w, (COUT, CIN, K, K), jnp.float32, -bound, bound)
    bias = jax.random.uniform(k_b, (COUT,), jnp.float32, -bound, bound)

    conv_fn = jax.jit(conv2d_pallas)          # fuse layout glue with the call
    y = conv_fn(x, weight, bias)
    y = jax.block_until_ready(y)
    assert y.shape == (N, COUT, H - K + 1, W - K + 1)

    # Reference 1: bf16-matched (same MXU precision) -- tight tolerance.
    y_ref_bf16 = lax.conv_general_dilated(
        x.astype(jnp.bfloat16), weight.astype(jnp.bfloat16),
        window_strides=(1, 1), padding="VALID",
        dimension_numbers=("NCHW", "OIHW", "NCHW"),
        preferred_element_type=jnp.float32,
    ) + bias[None, :, None, None]
    assert jnp.allclose(y, y_ref_bf16, atol=1e-3, rtol=1e-3)

    # Reference 2: full f32 conv -- loose tolerance (bf16 quantization of operands).
    y_ref_f32 = lax.conv_general_dilated(
        x, weight, window_strides=(1, 1), padding="VALID",
        dimension_numbers=("NCHW", "OIHW", "NCHW"),
    ) + bias[None, :, None, None]
    assert jnp.allclose(y, y_ref_f32, atol=2e-2, rtol=2e-2)

    print("KERNEL_OK")
</pallas_src>

<mosaic_0001>
module attributes {stable_mosaic.version = 11 : i64} {
  func.func @_conv2d_kernel(%arg0: i32, %arg1: memref<2x18x64xbf16, #tpu.memory_space<vmem>>, %arg2: memref<192x128xbf16, #tpu.memory_space<vmem>>, %arg3: memref<1x128xf32, #tpu.memory_space<vmem>>, %arg4: memref<2x16x128xf32, #tpu.memory_space<vmem>>) attributes {dimension_semantics = [#tpu.dimension_semantics<parallel>], iteration_bounds = array<i64: 1>, scalar_prefetch = 0 : i64, scratch_operands = 0 : i64, tpu.core_type = #tpu.core_type<tc>, window_params = [{transform_indices = @transform_0, window_bounds = array<i64: 2, 18, 64>}, {pipeline_mode = #tpu.pipeline_mode<synchronous>, transform_indices = @transform_1, window_bounds = array<i64: 192, 128>}, {pipeline_mode = #tpu.pipeline_mode<synchronous>, transform_indices = @transform_2, window_bounds = array<i64: 1, 128>}, {transform_indices = @transform_3, window_bounds = array<i64: 2, 16, 128>}]} {
    %c0 = arith.constant 0 : index
    %c0_0 = arith.constant 0 : index
    %c0_1 = arith.constant 0 : index
    %0 = vector.load %arg1[%c0, %c0_0, %c0_1] : memref<2x18x64xbf16, #tpu.memory_space<vmem>>, vector<1x18x64xbf16>
    %1 = vector.shape_cast %0 : vector<1x18x64xbf16> to vector<18x64xbf16>
    %cst = arith.constant 0.000000e+00 : f32
    %2 = vector.broadcast %cst : f32 to vector<16x128xf32>
    %3 = vector.extract_strided_slice %1 {offsets = [0, 0], sizes = [16, 64], strides = [1, 1]} : vector<18x64xbf16> to vector<16x64xbf16>
    %c0_2 = arith.constant 0 : index
    %c0_3 = arith.constant 0 : index
    %4 = vector.load %arg2[%c0_2, %c0_3] : memref<192x128xbf16, #tpu.memory_space<vmem>>, vector<64x128xbf16>
    %cst_4 = arith.constant dense<0.000000e+00> : vector<16x128xf32>
    %5 = tpu.matmul %3, %4, %cst_4 {dimension_numbers = #tpu.dot_dimension_numbers<[1], [0], [0], [1], [0, 0, 1, 1], [], []>} : vector<16x64xbf16>, vector<64x128xbf16>, vector<16x128xf32> -> vector<16x128xf32>
    %6 = arith.addf %2, %5 : vector<16x128xf32>
    %7 = vector.extract_strided_slice %1 {offsets = [1, 0], sizes = [16, 64], strides = [1, 1]} : vector<18x64xbf16> to vector<16x64xbf16>
    %c64 = arith.constant 64 : index
    %c0_5 = arith.constant 0 : index
    %8 = vector.load %arg2[%c64, %c0_5] : memref<192x128xbf16, #tpu.memory_space<vmem>>, vector<64x128xbf16>
    %cst_6 = arith.constant dense<0.000000e+00> : vector<16x128xf32>
    %9 = tpu.matmul %7, %8, %cst_6 {dimension_numbers = #tpu.dot_dimension_numbers<[1], [0], [0], [1], [0, 0, 1, 1], [], []>} : vector<16x64xbf16>, vector<64x128xbf16>, vector<16x128xf32> -> vector<16x128xf32>
    %10 = arith.addf %6, %9 : vector<16x128xf32>
    %11 = vector.extract_strided_slice %1 {offsets = [2, 0], sizes = [16, 64], strides = [1, 1]} : vector<18x64xbf16> to vector<16x64xbf16>
    %c128 = arith.constant 128 : index
    %c0_7 = arith.constant 0 : index
    %12 = vector.load %arg2[%c128, %c0_7] : memref<192x128xbf16, #tpu.memory_space<vmem>>, vector<64x128xbf16>
    %cst_8 = arith.constant dense<0.000000e+00> : vector<16x128xf32>
    %13 = tpu.matmul %11, %12, %cst_8 {dimension_numbers = #tpu.dot_dimension_numbers<[1], [0], [0], [1], [0, 0, 1, 1], [], []>} : vector<16x64xbf16>, vector<64x128xbf16>, vector<16x128xf32> -> vector<16x128xf32>
    %14 = arith.addf %10, %13 : vector<16x128xf32>
    %c0_9 = arith.constant 0 : index
    %c0_10 = arith.constant 0 : index
    %15 = vector.load %arg3[%c0_9, %c0_10] : memref<1x128xf32, #tpu.memory_space<vmem>>, vector<1x128xf32>
    %16 = vector.broadcast %15 : vector<1x128xf32> to vector<16x128xf32>
    %17 = arith.addf %14, %16 : vector<16x128xf32>
    %c0_11 = arith.constant 0 : index
    %c0_12 = arith.constant 0 : index
    %c0_13 = arith.constant 0 : index
    %18 = vector.load %arg4[%c0_11, %c0_12, %c0_13] : memref<2x16x128xf32, #tpu.memory_space<vmem>>, vector<1x16x128xf32>
    %19 = vector.shape_cast %18 : vector<1x16x128xf32> to vector<16x128xf32>
    %20 = vector.shape_cast %17 : vector<16x128xf32> to vector<1x16x128xf32>
    tpu.vector_store %arg4[%c0_11, %c0_12, %c0_13], %20 {strides = array<i32>} : memref<2x16x128xf32, #tpu.memory_space<vmem>>, vector<1x16x128xf32>,
    %c1 = arith.constant 1 : index
    %c0_14 = arith.constant 0 : index
    %c0_15 = arith.constant 0 : index
    %21 = vector.load %arg1[%c1, %c0_14, %c0_15] : memref<2x18x64xbf16, #tpu.memory_space<vmem>>, vector<1x18x64xbf16>
    %22 = vector.shape_cast %21 : vector<1x18x64xbf16> to vector<18x64xbf16>
    %cst_16 = arith.constant 0.000000e+00 : f32
    %23 = vector.broadcast %cst_16 : f32 to vector<16x128xf32>
    %24 = vector.extract_strided_slice %22 {offsets = [0, 0], sizes = [16, 64], strides = [1, 1]} : vector<18x64xbf16> to vector<16x64xbf16>
    %c0_17 = arith.constant 0 : index
    %c0_18 = arith.constant 0 : index
    %25 = vector.load %arg2[%c0_17, %c0_18] : memref<192x128xbf16, #tpu.memory_space<vmem>>, vector<64x128xbf16>
    %cst_19 = arith.constant dense<0.000000e+00> : vector<16x128xf32>
    %26 = tpu.matmul %24, %25, %cst_19 {dimension_numbers = #tpu.dot_dimension_numbers<[1], [0], [0], [1], [0, 0, 1, 1], [], []>} : vector<16x64xbf16>, vector<64x128xbf16>, vector<16x128xf32> -> vector<16x128xf32>
    %27 = arith.addf %23, %26 : vector<16x128xf32>
    %28 = vector.extract_strided_slice %22 {offsets = [1, 0], sizes = [16, 64], strides = [1, 1]} : vector<18x64xbf16> to vector<16x64xbf16>
    %c64_20 = arith.constant 64 : index
    %c0_21 = arith.constant 0 : index
    %29 = vector.load %arg2[%c64_20, %c0_21] : memref<192x128xbf16, #tpu.memory_space<vmem>>, vector<64x128xbf16>
    %cst_22 = arith.constant dense<0.000000e+00> : vector<16x128xf32>
    %30 = tpu.matmul %28, %29, %cst_22 {dimension_numbers = #tpu.dot_dimension_numbers<[1], [0], [0], [1], [0, 0, 1, 1], [], []>} : vector<16x64xbf16>, vector<64x128xbf16>, vector<16x128xf32> -> vector<16x128xf32>
    %31 = arith.addf %27, %30 : vector<16x128xf32>
    %32 = vector.extract_strided_slice %22 {offsets = [2, 0], sizes = [16, 64], strides = [1, 1]} : vector<18x64xbf16> to vector<16x64xbf16>
    %c128_23 = arith.constant 128 : index
    %c0_24 = arith.constant 0 : index
    %33 = vector.load %arg2[%c128_23, %c0_24] : memref<192x128xbf16, #tpu.memory_space<vmem>>, vector<64x128xbf16>
    %cst_25 = arith.constant dense<0.000000e+00> : vector<16x128xf32>
    %34 = tpu.matmul %32, %33, %cst_25 {dimension_numbers = #tpu.dot_dimension_numbers<[1], [0], [0], [1], [0, 0, 1, 1], [], []>} : vector<16x64xbf16>, vector<64x128xbf16>, vector<16x128xf32> -> vector<16x128xf32>
    %35 = arith.addf %31, %34 : vector<16x128xf32>
    %c0_26 = arith.constant 0 : index
    %c0_27 = arith.constant 0 : index
    %36 = vector.load %arg3[%c0_26, %c0_27] : memref<1x128xf32, #tpu.memory_space<vmem>>, vector<1x128xf32>
    %37 = vector.broadcast %36 : vector<1x128xf32> to vector<16x128xf32>
    %38 = arith.addf %35, %37 : vector<16x128xf32>
    %c1_28 = arith.constant 1 : index
    %c0_29 = arith.constant 0 : index
    %c0_30 = arith.constant 0 : index
    %39 = vector.load %arg4[%c1_28, %c0_29, %c0_30] : memref<2x16x128xf32, #tpu.memory_space<vmem>>, vector<1x16x128xf32>
    %40 = vector.shape_cast %39 : vector<1x16x128xf32> to vector<16x128xf32>
    %41 = vector.shape_cast %38 : vector<16x128xf32> to vector<1x16x128xf32>
    tpu.vector_store %arg4[%c1_28, %c0_29, %c0_30], %41 {strides = array<i32>} : memref<2x16x128xf32, #tpu.memory_space<vmem>>, vector<1x16x128xf32>,
    return
  }
  func.func @transform_0(%arg0: i32) -> (i32, i32, i32) {
    %c0_i32 = arith.constant 0 : i32
    %c0_i32_0 = arith.constant 0 : i32
    %c0_i32_1 = arith.constant 0 : i32
    return %arg0, %c0_i32, %c0_i32_0 : i32, i32, i32
  }
  func.func @transform_1(%arg0: i32) -> (i32, i32) {
    %c0_i32 = arith.constant 0 : i32
    %c0_i32_0 = arith.constant 0 : i32
    %c0_i32_1 = arith.constant 0 : i32
    return %c0_i32, %c0_i32_0 : i32, i32
  }
  func.func @transform_2(%arg0: i32) -> (i32, i32) {
    %c0_i32 = arith.constant 0 : i32
    %c0_i32_0 = arith.constant 0 : i32
    %c0_i32_1 = arith.constant 0 : i32
    return %c0_i32, %c0_i32_0 : i32, i32
  }
  func.func @transform_3(%arg0: i32) -> (i32, i32, i32) {
    %c0_i32 = arith.constant 0 : i32
    %c0_i32_0 = arith.constant 0 : i32
    %c0_i32_1 = arith.constant 0 : i32
    return %arg0, %c0_i32, %c0_i32_0 : i32, i32, i32
  }
}

</mosaic_0001>

<llo_original>
// kernel: tile.8
$region0: #{tile.8}
  #allocation0 [shape = 's32[1]{0}', space=sflag, size = 0x4, scoped, tag = 'scoped memory for tile.8']
  %s0 = inlined_call_operand.vmem [shape: f32[8], index: 0, kind: input, shape index: {}]
  %s1 = inlined_call_operand.vmem [shape: f32[14,8], index: 1, kind: output, shape index: {}]
  // Predicated region
  $region2: #{tile.8} parent=0 // pred_check
    _
  $region3: #{tile.8} parent=0 // pred_check_branch
    %3 = sbr.rel (0) target = $region5
  $region4: #{tile.8} parent=0 // pred_region
    _
  $region5: #{tile.8} parent=0 // pred_fallthru
    _
  %v4 = vld [vmem:[%s0] ss:$0 sm:$0xff]
  %5 = vst [vmem:[%s1] sm:$0xff] %v4
  %s6 = scalar_lea.vmem %s1, 8
  %7 = vst [vmem:[%s6] sm:$0xff] %v4

// kernel: tile.9
$region0: #{tile.9}
  %s0 = inlined_call_operand.vmem [shape: f32[14,8], index: 0, kind: input, shape index: {}]
  %s1 = inlined_call_operand.vmem [shape: f32[112], index: 1, kind: output, shape index: {}]
  $region1: #{tile.9} parent=0
    #allocation0 [shape = 'u8[4096]{0}', space=vmem, size = 0x1000, scoped, tag = 'scoped mem for output reshape']
    %v2 = vld [vmem:[%s0] sm:$0x1]
    %vm3 = vcmask 64512
    %4 = vst.msk [vmem:[#allocation0] sm:$0x1] %vm3, %v2
    %s5 = scalar_lea.vmem %s0, 13
    %v6 = vld [vmem:[%s5] sm:$0x1]
    %7 = vrot.lane.b32.xlu0 %v6, 104
    %v8 = vpop.permute.xlu0 %7
    %vm9 = vcmask 917312
    %10 = vst.msk [vmem:[#allocation0] sm:$0x1] %vm9, %v8
    %s11 = scalar_lea.vmem %s0, 12
    %v12 = vld [vmem:[%s11] sm:$0x1]
    %13 = vrot.lane.b32.xlu0 %v12, 96
    %v14 = vpop.permute.xlu0 %13
    %vm15 = vcmask 851712
    %16 = vst.msk [vmem:[#allocation0] sm:$0x1] %vm15, %v14
    %s17 = scalar_lea.vmem %s0, 11
    %v18 = vld [vmem:[%s17] sm:$0x1]
    %19 = vrot.lane.b32.xlu0 %v18, 88
    %v20 = vpop.permute.xlu0 %19
    %vm21 = vcmask 786112
    %22 = vst.msk [vmem:[#allocation0] sm:$0x1] %vm21, %v20
    %s23 = scalar_lea.vmem %s0, 10
    %v24 = vld [vmem:[%s23] sm:$0x1]
    %25 = vrot.lane.b32.xlu0 %v24, 80
    %v26 = vpop.permute.xlu0 %25
    %vm27 = vcmask 720512
    %28 = vst.msk [vmem:[#allocation0] sm:$0x1] %vm27, %v26
    %s29 = scalar_lea.vmem %s0, 9
    %v30 = vld [vmem:[%s29] sm:$0x1]
    %31 = vrot.lane.b32.xlu0 %v30, 72
    %v32 = vpop.permute.xlu0 %31
    %vm33 = vcmask 654912
    %34 = vst.msk [vmem:[#allocation0] sm:$0x1] %vm33, %v32
    %s35 = scalar_lea.vmem %s0, 8
    %v36 = vld [vmem:[%s35] sm:$0x1]
    %37 = vrot.lane.b32.xlu0 %v36, 64
    %v38 = vpop.permute.xlu0 %37
    %vm39 = vcmask 589312
    %40 = vst.msk [vmem:[#allocation0] sm:$0x1] %vm39, %v38
    %s41 = scalar_lea.vmem %s0, 7
    %v42 = vld [vmem:[%s41] sm:$0x1]
    %43 = vrot.lane.b32.xlu0 %v42, 56
    %v44 = vpop.permute.xlu0 %43
    %vm45 = vcmask 523712
    %46 = vst.msk [vmem:[#allocation0] sm:$0x1] %vm45, %v44
    %s47 = scalar_lea.vmem %s0, 6
    %v48 = vld [vmem:[%s47] sm:$0x1]
    %49 = vrot.lane.b32.xlu0 %v48, 48
    %v50 = vpop.permute.xlu0 %49
    %vm51 = vcmask 458112
    %52 = vst.msk [vmem:[#allocation0] sm:$0x1] %vm51, %v50
    %s53 = scalar_lea.vmem %s0, 5
    %v54 = vld [vmem:[%s53] sm:$0x1]
    %55 = vrot.lane.b32.xlu0 %v54, 40
    %v56 = vpop.permute.xlu0 %55
    %vm57 = vcmask 392512
    %58 = vst.msk [vmem:[#allocation0] sm:$0x1] %vm57, %v56
    %s59 = scalar_lea.vmem %s0, 4
    %v60 = vld [vmem:[%s59] sm:$0x1]
    %61 = vrot.lane.b32.xlu0 %v60, 32
    %v62 = vpop.permute.xlu0 %61
    %vm63 = vcmask 326912
    %64 = vst.msk [vmem:[#allocation0] sm:$0x1] %vm63, %v62
    %s65 = scalar_lea.vmem %s0, 3
    %v66 = vld [vmem:[%s65] sm:$0x1]
    %67 = vrot.lane.b32.xlu0 %v66, 24
    %v68 = vpop.permute.xlu0 %67
    %vm69 = vcmask 261312
    %70 = vst.msk [vmem:[#allocation0] sm:$0x1] %vm69, %v68
    %s71 = scalar_lea.vmem %s0, 2
    %v72 = vld [vmem:[%s71] sm:$0x1]
    %73 = vrot.lane.b32.xlu0 %v72, 16
    %v74 = vpop.permute.xlu0 %73
    %vm75 = vcmask 195712
    %76 = vst.msk [vmem:[#allocation0] sm:$0x1] %vm75, %v74
    %s77 = scalar_lea.vmem %s0, 1
    %v78 = vld [vmem:[%s77] sm:$0x1]
    %79 = vrot.lane.b32.xlu0 %v78, 8
    %v80 = vpop.permute.xlu0 %79
    %vm81 = vcmask 130112
    %82 = vst.msk [vmem:[#allocation0] sm:$0x1] %vm81, %v80
    %s84 = sshll.u32 1, 1
    %s85 = ssub.s32 %s84, 1
    %v87 = vld [vmem:[#allocation0] sm:%s85]
    %s88 = sshll.u32 1, 1
    %s89 = ssub.s32 %s88, 1
    %90 = vst [vmem:[%s1] sm:%s89] %v87

// kernel: conv2d_pallas.1
$region0: #{conv2d_pallas.1}
  #allocation0 [shape = 'u32[]', space=smem, size = 0x4, offset = 0x4, fixed_abs, tag = 'smem constant byte address 0x4 - core index']
  #allocation1 [shape = 'u32[144,128]{1,0:T(1,128)}', space=vmem, size = 0x12000, scoped, tag = 'internal scratch']
  %s0 = inlined_call_operand.vmem [shape: bf16[2,18,64], index: 0, kind: input, shape index: {}]
  %s1 = inlined_call_operand.vmem [shape: bf16[192,128], index: 1, kind: input, shape index: {}]
  %s2 = inlined_call_operand.vmem [shape: f32[1,128], index: 2, kind: input, shape index: {}]
  %s3 = inlined_call_operand.vmem [shape: f32[2,16,128], index: 3, kind: output, shape index: {}]
  %s4 = sld [smem:[#allocation0]]
  $region22: #{conv2d_pallas.1} parent=0
    _
  %s6 = ssub.s32 1, %s4
  %s7 = scalar_select 0, %s6, %s4
  // Predicated region
  $region2: #{conv2d_pallas.1} parent=0 // pred_check
    _
  $region3: #{conv2d_pallas.1} parent=0 // pred_check_branch
    %9 = sbr.rel (0) target = $region5
  $region4: #{conv2d_pallas.1} parent=0 // pred_region
    _
  $region5: #{conv2d_pallas.1} parent=0 // pred_fallthru
    _
  // Predicated region
  $region6: #{conv2d_pallas.1} parent=0 // pred_check
    _
  $region7: #{conv2d_pallas.1} parent=0 // pred_check_branch
    %11 = sbr.rel (0) target = $region9
  $region8: #{conv2d_pallas.1} parent=0 // pred_region
    _
  $region9: #{conv2d_pallas.1} parent=0 // pred_fallthru
    _
  // Predicated region
  $region10: #{conv2d_pallas.1} parent=0 // pred_check
    _
  $region11: #{conv2d_pallas.1} parent=0 // pred_check_branch
    %13 = sbr.rel (0) target = $region13
  $region12: #{conv2d_pallas.1} parent=0 // pred_region
    _
  $region13: #{conv2d_pallas.1} parent=0 // pred_fallthru
    _
  %v15 = vld [vmem:[%s0] sm:$0xf]
  %v16 = vld [vmem:[%s0 + $0x4] sm:$0xf]
  %v17 = vld [vmem:[%s0 + $0x8] sm:$0x1]
  %v18 = vld [vmem:[%s1] sm:$0xf]
  %v19 = vld [vmem:[%s1 + $0x4] sm:$0xf]
  %v20 = vld [vmem:[%s1 + $0x8] sm:$0xf]
  %v21 = vld [vmem:[%s1 + $0xc] sm:$0xf]
  %v22 = vld [vmem:[%s1 + $0x10] sm:$0xf]
  %v23 = vld [vmem:[%s1 + $0x14] sm:$0xf]
  %v24 = vld [vmem:[%s1 + $0x18] sm:$0xf]
  %v25 = vld [vmem:[%s1 + $0x1c] sm:$0xf]
  %v26 = vld [vmem:[%s1 + $0x20] sm:$0xf]
  %v27 = vld [vmem:[%s1 + $0x24] sm:$0xf]
  %v28 = vld [vmem:[%s1 + $0x28] sm:$0xf]
  %v29 = vld [vmem:[%s1 + $0x2c] sm:$0xf]
  %v30 = vld [vmem:[%s1 + $0x30] sm:$0xf]
  %v31 = vld [vmem:[%s1 + $0x34] sm:$0xf]
  %v32 = vld [vmem:[%s1 + $0x38] sm:$0xf]
  %v33 = vld [vmem:[%s1 + $0x3c] sm:$0xf]
  %v37 = vunpack.c.l.b16 %v15
  %v38 = vunpack.c.l.b16 %v16
  %v39 = vunpack.c.l.b16 %v17
  %v40 = vpack.c.b16 %v38, %v37
  %v41 = vpack.c.b16 %v39, %v39
  %vm42 = vsmask.f32 7424
  %v44 = vshrl.u32 %v40, 16
  %v46 = vshll.u32 %v40, 16
  %v48 = vrot.slane %v46, 1
  %v49 = vor.u32 %v44, %v48
  %v51 = vshll.u32 %v41, 16
  %v53 = vrot.slane %v51, 1
  %v54 = vsel %vm42, %v49, %v53
  %v63 = vunpack.c.l.b16 %v26
  %v64 = vunpack.c.l.b16 %v27
  %v65 = vunpack.c.l.b16 %v28
  %v66 = vunpack.c.l.b16 %v29
  %v67 = vunpack.c.l.b16 %v30
  %v68 = vunpack.c.l.b16 %v31
  %v69 = vunpack.c.l.b16 %v32
  %v70 = vunpack.c.l.b16 %v33
  %v71 = vpack.c.b16 %v64, %v63
  %v72 = vpack.c.b16 %v66, %v65
  %v73 = vpack.c.b16 %v68, %v67
  %v74 = vpack.c.b16 %v70, %v69
  %vm79 = vcmask 523264
  %v81 = vsel %vm79, %v54, 0
  %83 = vmatprep.subr.bf16.mxu0 0
  %84 = vmatpush1.bf16.msra.mxu0 0
  %85 = vmatprep.subr.bf16.mxu0 0
  %86 = vmatpush1.bf16.msra.mxu0 0
  %87 = vmatprep.subr.bf16.mxu0 0
  %88 = vmatpush1.bf16.msra.mxu0 0
  %89 = vmatprep.subr.bf16.mxu0 0
  %90 = vmatpush1.bf16.msra.mxu0 0
  %91 = vmatprep.subr.bf16.mxu0 0
  %92 = vmatpush1.bf16.msra.mxu0 %v74
  %93 = vmatprep.subr.bf16.mxu0 0
  %94 = vmatpush1.bf16.msra.mxu0 %v73
  %95 = vmatprep.subr.bf16.mxu0 0
  %96 = vmatpush1.bf16.msra.mxu0 %v72
  %97 = vmatprep.subr.bf16.mxu0 0
  %98 = vmatpush1.bf16.msra.mxu0 %v71
  %99 = vmatprep.subr.bf16.mxu0 0
  %100 = vmatpush2.bf16.msra.mxu0 0
  %101 = vmatprep.subr.bf16.mxu0 0
  %102 = vmatpush2.bf16.msra.mxu0 0
  %103 = vmatprep.subr.bf16.mxu0 0
  %104 = vmatpush2.bf16.msra.mxu0 0
  %105 = vmatprep.subr.bf16.mxu0 0
  %106 = vmatpush2.bf16.msra.mxu0 0
  %107 = vmatprep.subr.bf16.mxu0 0
  %108 = vmatpush2.bf16.msra.mxu0 0
  %109 = vmatprep.subr.bf16.mxu0 0
  %110 = vmatpush2.bf16.msra.mxu0 0
  %111 = vmatprep.subr.bf16.mxu0 0
  %112 = vmatpush2.bf16.msra.mxu0 0
  %113 = vmatprep.subr.bf16.mxu0 0
  %114 = vmatpush2.bf16.msra.mxu0 0
  %115 = vmatprep.mubr.bf16.mxu0 0
  %116 = vmatmul.mubr.bf16.gmra.mxu0 %v81
  %v117 = vpop.f32.mrf.mxu0
  %v118 = vadd.f32 0.0, %v117
  %v119 = vpop.f32.mrf.mxu0
  %v120 = vpop.f32.mrf.mxu0
  %v121 = vadd.f32 0.0, %v120
  %v122 = vpop.f32.mrf.mxu0
  %123 = vdwg.mxu0
  %v132 = vunpack.c.l.b16 %v18
  %v133 = vunpack.c.l.b16 %v19
  %v134 = vunpack.c.l.b16 %v20
  %v135 = vunpack.c.l.b16 %v21
  %v136 = vunpack.c.l.b16 %v22
  %v137 = vunpack.c.l.b16 %v23
  %v138 = vunpack.c.l.b16 %v24
  %v139 = vunpack.c.l.b16 %v25
  %v140 = vpack.c.b16 %v133, %v132
  %v141 = vpack.c.b16 %v135, %v134
  %v142 = vpack.c.b16 %v137, %v136
  %v143 = vpack.c.b16 %v139, %v138
  %v148 = vsel %vm79, %v40, 0
  %150 = vmatprep.subr.bf16.mxu0 0
  %151 = vmatpush1.bf16.msra.mxu0 0
  %152 = vmatprep.subr.bf16.mxu0 0
  %153 = vmatpush1.bf16.msra.mxu0 0
  %154 = vmatprep.subr.bf16.mxu0 0
  %155 = vmatpush1.bf16.msra.mxu0 0
  %156 = vmatprep.subr.bf16.mxu0 0
  %157 = vmatpush1.bf16.msra.mxu0 0
  %158 = vmatprep.subr.bf16.mxu0 0
  %159 = vmatpush1.bf16.msra.mxu0 %v143
  %160 = vmatprep.subr.bf16.mxu0 0
  %161 = vmatpush1.bf16.msra.mxu0 %v142
  %162 = vmatprep.subr.bf16.mxu0 0
  %163 = vmatpush1.bf16.msra.mxu0 %v141
  %164 = vmatprep.subr.bf16.mxu0 0
  %165 = vmatpush1.bf16.msra.mxu0 %v140
  %166 = vmatprep.subr.bf16.mxu0 0
  %167 = vmatpush2.bf16.msra.mxu0 0
  %168 = vmatprep.subr.bf16.mxu0 0
  %169 = vmatpush2.bf16.msra.mxu0 0
  %170 = vmatprep.subr.bf16.mxu0 0
  %171 = vmatpush2.bf16.msra.mxu0 0
  %172 = vmatprep.subr.bf16.mxu0 0
  %173 = vmatpush2.bf16.msra.mxu0 0
  %174 = vmatprep.subr.bf16.mxu0 0
  %175 = vmatpush2.bf16.msra.mxu0 0
  %176 = vmatprep.subr.bf16.mxu0 0
  %177 = vmatpush2.bf16.msra.mxu0 0
  %178 = vmatprep.subr.bf16.mxu0 0
  %179 = vmatpush2.bf16.msra.mxu0 0
  %180 = vmatprep.subr.bf16.mxu0 0
  %181 = vmatpush2.bf16.msra.mxu0 0
  %182 = vmatprep.mubr.bf16.mxu0 0
  %183 = vmatmul.mubr.bf16.gmra.mxu0 %v148
  %v184 = vpop.f32.mrf.mxu0
  %v185 = vadd.f32 %v118, %v184
  %v186 = vpop.f32.mrf.mxu0
  %v187 = vpop.f32.mrf.mxu0
  %v188 = vadd.f32 %v121, %v187
  %v189 = vpop.f32.mrf.mxu0
  %190 = vdwg.mxu0
  %v191 = vld [vmem:[%s1 + $0x40] sm:$0xf]
  %v192 = vld [vmem:[%s1 + $0x44] sm:$0xf]
  %v193 = vld [vmem:[%s1 + $0x48] sm:$0xf]
  %v194 = vld [vmem:[%s1 + $0x4c] sm:$0xf]
  %v195 = vld [vmem:[%s1 + $0x50] sm:$0xf]
  %v196 = vld [vmem:[%s1 + $0x54] sm:$0xf]
  %v197 = vld [vmem:[%s1 + $0x58] sm:$0xf]
  %v198 = vld [vmem:[%s1 + $0x5c] sm:$0xf]
  %vm199 = vcmask 1046528
  %v200 = vrot.slane %v40, 1
  %v201 = vrot.slane %v41, 1
  %v202 = vsel %vm199, %v200, %v201
  %v211 = vunpack.c.l.b16 %v191
  %v212 = vunpack.c.l.b16 %v192
  %v213 = vunpack.c.l.b16 %v193
  %v214 = vunpack.c.l.b16 %v194
  %v215 = vunpack.c.l.b16 %v195
  %v216 = vunpack.c.l.b16 %v196
  %v217 = vunpack.c.l.b16 %v197
  %v218 = vunpack.c.l.b16 %v198
  %v219 = vpack.c.b16 %v212, %v211
  %v220 = vpack.c.b16 %v214, %v213
  %v221 = vpack.c.b16 %v216, %v215
  %v222 = vpack.c.b16 %v218, %v217
  %v228 = vsel %vm79, %v202, 0
  %230 = vmatprep.subr.bf16.mxu0 0
  %231 = vmatpush1.bf16.msra.mxu0 0
  %232 = vmatprep.subr.bf16.mxu0 0
  %233 = vmatpush1.bf16.msra.mxu0 0
  %234 = vmatprep.subr.bf16.mxu0 0
  %235 = vmatpush1.bf16.msra.mxu0 0
  %236 = vmatprep.subr.bf16.mxu0 0
  %237 = vmatpush1.bf16.msra.mxu0 0
  %238 = vmatprep.subr.bf16.mxu0 0
  %239 = vmatpush1.bf16.msra.mxu0 %v222
  %240 = vmatprep.subr.bf16.mxu0 0
  %241 = vmatpush1.bf16.msra.mxu0 %v221
  %242 = vmatprep.subr.bf16.mxu0 0
  %243 = vmatpush1.bf16.msra.mxu0 %v220
  %244 = vmatprep.subr.bf16.mxu0 0
  %245 = vmatpush1.bf16.msra.mxu0 %v219
  %246 = vmatprep.subr.bf16.mxu0 0
  %247 = vmatpush2.bf16.msra.mxu0 0
  %248 = vmatprep.subr.bf16.mxu0 0
  %249 = vmatpush2.bf16.msra.mxu0 0
  %250 = vmatprep.subr.bf16.mxu0 0
  %251 = vmatpush2.bf16.msra.mxu0 0
  %252 = vmatprep.subr.bf16.mxu0 0
  %253 = vmatpush2.bf16.msra.mxu0 0
  %254 = vmatprep.subr.bf16.mxu0 0
  %255 = vmatpush2.bf16.msra.mxu0 0
  %256 = vmatprep.subr.bf16.mxu0 0
  %257 = vmatpush2.bf16.msra.mxu0 0
  %258 = vmatprep.subr.bf16.mxu0 0
  %259 = vmatpush2.bf16.msra.mxu0 0
  %260 = vmatprep.subr.bf16.mxu0 0
  %261 = vmatpush2.bf16.msra.mxu0 0
  %262 = vmatprep.mubr.bf16.mxu0 0
  %263 = vmatmul.mubr.bf16.gmra.mxu0 %v228
  %v264 = vpop.f32.mrf.mxu0
  %v265 = vadd.f32 0.0, %v264
  %v266 = vpop.f32.mrf.mxu0
  %v267 = vpop.f32.mrf.mxu0
  %v268 = vadd.f32 0.0, %v267
  %v269 = vpop.f32.mrf.mxu0
  %270 = vdwg.mxu0
  %v271 = vadd.f32 %v185, %v265
  %v272 = vadd.f32 %v188, %v268
  %v273 = vld [vmem:[%s2] sm:$0x1]
  %v275 = vlaneseq
  %v276 = vshrl.u32 %v275, 7
  %v277 = vsub.s32 0, %v276
  %v278 = vrot.slane %v273, %v277
  %v280 = vadd.f32 %v271, %v278
  %v281 = vadd.f32 %v272, %v278
  %282 = vst [vmem:[%s3] sm:$0xff] %v280
  %283 = vst [vmem:[%s3 + $0x8] sm:$0xff] %v281
  %s284 = scalar_lea.vmem %s0, 12
  %v285 = vld [vmem:[%s284] sm:$0xf]
  %v286 = vld [vmem:[%s284 + $0x4] sm:$0xf]
  %v287 = vld [vmem:[%s284 + $0x8] sm:$0x1]
  %v288 = vld [vmem:[%s1] sm:$0xf]
  %v289 = vld [vmem:[%s1 + $0x4] sm:$0xf]
  %v290 = vld [vmem:[%s1 + $0x8] sm:$0xf]
  %v291 = vld [vmem:[%s1 + $0xc] sm:$0xf]
  %v292 = vld [vmem:[%s1 + $0x10] sm:$0xf]
  %v293 = vld [vmem:[%s1 + $0x14] sm:$0xf]
  %v294 = vld [vmem:[%s1 + $0x18] sm:$0xf]
  %v295 = vld [vmem:[%s1 + $0x1c] sm:$0xf]
  %v296 = vld [vmem:[%s1 + $0x20] sm:$0xf]
  %v297 = vld [vmem:[%s1 + $0x24] sm:$0xf]
  %v298 = vld [vmem:[%s1 + $0x28] sm:$0xf]
  %v299 = vld [vmem:[%s1 + $0x2c] sm:$0xf]
  %v300 = vld [vmem:[%s1 + $0x30] sm:$0xf]
  %v301 = vld [vmem:[%s1 + $0x34] sm:$0xf]
  %v302 = vld [vmem:[%s1 + $0x38] sm:$0xf]
  %v303 = vld [vmem:[%s1 + $0x3c] sm:$0xf]
  %v307 = vunpack.c.l.b16 %v285
  %v308 = vunpack.c.l.b16 %v286
  %v309 = vunpack.c.l.b16 %v287
  %v310 = vpack.c.b16 %v308, %v307
  %v311 = vpack.c.b16 %v309, %v309
  %v313 = vshrl.u32 %v310, 16
  %v315 = vshll.u32 %v310, 16
  %v317 = vrot.slane %v315, 1
  %v318 = vor.u32 %v313, %v317
  %v320 = vshll.u32 %v311, 16
  %v322 = vrot.slane %v320, 1
  %v323 = vsel %vm42, %v318, %v322
  %v332 = vunpack.c.l.b16 %v296
  %v333 = vunpack.c.l.b16 %v297
  %v334 = vunpack.c.l.b16 %v298
  %v335 = vunpack.c.l.b16 %v299
  %v336 = vunpack.c.l.b16 %v300
  %v337 = vunpack.c.l.b16 %v301
  %v338 = vunpack.c.l.b16 %v302
  %v339 = vunpack.c.l.b16 %v303
  %v340 = vpack.c.b16 %v333, %v332
  %v341 = vpack.c.b16 %v335, %v334
  %v342 = vpack.c.b16 %v337, %v336
  %v343 = vpack.c.b16 %v339, %v338
  %v349 = vsel %vm79, %v323, 0
  %351 = vmatprep.subr.bf16.mxu0 0
  %352 = vmatpush1.bf16.msra.mxu0 0
  %353 = vmatprep.subr.bf16.mxu0 0
  %354 = vmatpush1.bf16.msra.mxu0 0
  %355 = vmatprep.subr.bf16.mxu0 0
  %356 = vmatpush1.bf16.msra.mxu0 0
  %357 = vmatprep.subr.bf16.mxu0 0
  %358 = vmatpush1.bf16.msra.mxu0 0
  %359 = vmatprep.subr.bf16.mxu0 0
  %360 = vmatpush1.bf16.msra.mxu0 %v343
  %361 = vmatprep.subr.bf16.mxu0 0
  %362 = vmatpush1.bf16.msra.mxu0 %v342
  %363 = vmatprep.subr.bf16.mxu0 0
  %364 = vmatpush1.bf16.msra.mxu0 %v341
  %365 = vmatprep.subr.bf16.mxu0 0
  %366 = vmatpush1.bf16.msra.mxu0 %v340
  %367 = vmatprep.subr.bf16.mxu0 0
  %368 = vmatpush2.bf16.msra.mxu0 0
  %369 = vmatprep.subr.bf16.mxu0 0
  %370 = vmatpush2.bf16.msra.mxu0 0
  %371 = vmatprep.subr.bf16.mxu0 0
  %372 = vmatpush2.bf16.msra.mxu0 0
  %373 = vmatprep.subr.bf16.mxu0 0
  %374 = vmatpush2.bf16.msra.mxu0 0
  %375 = vmatprep.subr.bf16.mxu0 0
  %376 = vmatpush2.bf16.msra.mxu0 0
  %377 = vmatprep.subr.bf16.mxu0 0
  %378 = vmatpush2.bf16.msra.mxu0 0
  %379 = vmatprep.subr.bf16.mxu0 0
  %380 = vmatpush2.bf16.msra.mxu0 0
  %381 = vmatprep.subr.bf16.mxu0 0
  %382 = vmatpush2.bf16.msra.mxu0 0
  %383 = vmatprep.mubr.bf16.mxu0 0
  %384 = vmatmul.mubr.bf16.gmra.mxu0 %v349
  %v385 = vpop.f32.mrf.mxu0
  %v386 = vadd.f32 0.0, %v385
  %v387 = vpop.f32.mrf.mxu0
  %v388 = vpop.f32.mrf.mxu0
  %v389 = vadd.f32 0.0, %v388
  %v390 = vpop.f32.mrf.mxu0
  %391 = vdwg.mxu0
  %v400 = vunpack.c.l.b16 %v288
  %v401 = vunpack.c.l.b16 %v289
  %v402 = vunpack.c.l.b16 %v290
  %v403 = vunpack.c.l.b16 %v291
  %v404 = vunpack.c.l.b16 %v292
  %v405 = vunpack.c.l.b16 %v293
  %v406 = vunpack.c.l.b16 %v294
  %v407 = vunpack.c.l.b16 %v295
  %v408 = vpack.c.b16 %v401, %v400
  %v409 = vpack.c.b16 %v403, %v402
  %v410 = vpack.c.b16 %v405, %v404
  %v411 = vpack.c.b16 %v407, %v406
  %v416 = vsel %vm79, %v310, 0
  %418 = vmatprep.subr.bf16.mxu0 0
  %419 = vmatpush1.bf16.msra.mxu0 0
  %420 = vmatprep.subr.bf16.mxu0 0
  %421 = vmatpush1.bf16.msra.mxu0 0
  %422 = vmatprep.subr.bf16.mxu0 0
  %423 = vmatpush1.bf16.msra.mxu0 0
  %424 = vmatprep.subr.bf16.mxu0 0
  %425 = vmatpush1.bf16.msra.mxu0 0
  %426 = vmatprep.subr.bf16.mxu0 0
  %427 = vmatpush1.bf16.msra.mxu0 %v411
  %428 = vmatprep.subr.bf16.mxu0 0
  %429 = vmatpush1.bf16.msra.mxu0 %v410
  %430 = vmatprep.subr.bf16.mxu0 0
  %431 = vmatpush1.bf16.msra.mxu0 %v409
  %432 = vmatprep.subr.bf16.mxu0 0
  %433 = vmatpush1.bf16.msra.mxu0 %v408
  %434 = vmatprep.subr.bf16.mxu0 0
  %435 = vmatpush2.bf16.msra.mxu0 0
  %436 = vmatprep.subr.bf16.mxu0 0
  %437 = vmatpush2.bf16.msra.mxu0 0
  %438 = vmatprep.subr.bf16.mxu0 0
  %439 = vmatpush2.bf16.msra.mxu0 0
  %440 = vmatprep.subr.bf16.mxu0 0
  %441 = vmatpush2.bf16.msra.mxu0 0
  %442 = vmatprep.subr.bf16.mxu0 0
  %443 = vmatpush2.bf16.msra.mxu0 0
  %444 = vmatprep.subr.bf16.mxu0 0
  %445 = vmatpush2.bf16.msra.mxu0 0
  %446 = vmatprep.subr.bf16.mxu0 0
  %447 = vmatpush2.bf16.msra.mxu0 0
  %448 = vmatprep.subr.bf16.mxu0 0
  %449 = vmatpush2.bf16.msra.mxu0 0
  %450 = vmatprep.mubr.bf16.mxu0 0
  %451 = vmatmul.mubr.bf16.gmra.mxu0 %v416
  %v452 = vpop.f32.mrf.mxu0
  %v453 = vadd.f32 %v386, %v452
  %v454 = vpop.f32.mrf.mxu0
  %v455 = vpop.f32.mrf.mxu0
  %v456 = vadd.f32 %v389, %v455
  %v457 = vpop.f32.mrf.mxu0
  %458 = vdwg.mxu0
  %v459 = vld [vmem:[%s1 + $0x40] sm:$0xf]
  %v460 = vld [vmem:[%s1 + $0x44] sm:$0xf]
  %v461 = vld [vmem:[%s1 + $0x48] sm:$0xf]
  %v462 = vld [vmem:[%s1 + $0x4c] sm:$0xf]
  %v463 = vld [vmem:[%s1 + $0x50] sm:$0xf]
  %v464 = vld [vmem:[%s1 + $0x54] sm:$0xf]
  %v465 = vld [vmem:[%s1 + $0x58] sm:$0xf]
  %v466 = vld [vmem:[%s1 + $0x5c] sm:$0xf]
  %v467 = vrot.slane %v310, 1
  %v468 = vrot.slane %v311, 1
  %v469 = vsel %vm199, %v467, %v468
  %v478 = vunpack.c.l.b16 %v459
  %v479 = vunpack.c.l.b16 %v460
  %v480 = vunpack.c.l.b16 %v461
  %v481 = vunpack.c.l.b16 %v462
  %v482 = vunpack.c.l.b16 %v463
  %v483 = vunpack.c.l.b16 %v464
  %v484 = vunpack.c.l.b16 %v465
  %v485 = vunpack.c.l.b16 %v466
  %v486 = vpack.c.b16 %v479, %v478
  %v487 = vpack.c.b16 %v481, %v480
  %v488 = vpack.c.b16 %v483, %v482
  %v489 = vpack.c.b16 %v485, %v484
  %v495 = vsel %vm79, %v469, 0
  %497 = vmatprep.subr.bf16.mxu0 0
  %498 = vmatpush1.bf16.msra.mxu0 0
  %499 = vmatprep.subr.bf16.mxu0 0
  %500 = vmatpush1.bf16.msra.mxu0 0
  %501 = vmatprep.subr.bf16.mxu0 0
  %502 = vmatpush1.bf16.msra.mxu0 0
  %503 = vmatprep.subr.bf16.mxu0 0
  %504 = vmatpush1.bf16.msra.mxu0 0
  %505 = vmatprep.subr.bf16.mxu0 0
  %506 = vmatpush1.bf16.msra.mxu0 %v489
  %507 = vmatprep.subr.bf16.mxu0 0
  %508 = vmatpush1.bf16.msra.mxu0 %v488
  %509 = vmatprep.subr.bf16.mxu0 0
  %510 = vmatpush1.bf16.msra.mxu0 %v487
  %511 = vmatprep.subr.bf16.mxu0 0
  %512 = vmatpush1.bf16.msra.mxu0 %v486
  %513 = vmatprep.subr.bf16.mxu0 0
  %514 = vmatpush2.bf16.msra.mxu0 0
  %515 = vmatprep.subr.bf16.mxu0 0
  %516 = vmatpush2.bf16.msra.mxu0 0
  %517 = vmatprep.subr.bf16.mxu0 0
  %518 = vmatpush2.bf16.msra.mxu0 0
  %519 = vmatprep.subr.bf16.mxu0 0
  %520 = vmatpush2.bf16.msra.mxu0 0
  %521 = vmatprep.subr.bf16.mxu0 0
  %522 = vmatpush2.bf16.msra.mxu0 0
  %523 = vmatprep.subr.bf16.mxu0 0
  %524 = vmatpush2.bf16.msra.mxu0 0
  %525 = vmatprep.subr.bf16.mxu0 0
  %526 = vmatpush2.bf16.msra.mxu0 0
  %527 = vmatprep.subr.bf16.mxu0 0
  %528 = vmatpush2.bf16.msra.mxu0 0
  %529 = vmatprep.mubr.bf16.mxu0 0
  %530 = vmatmul.mubr.bf16.gmra.mxu0 %v495
  %v531 = vpop.f32.mrf.mxu0
  %v532 = vadd.f32 0.0, %v531
  %v533 = vpop.f32.mrf.mxu0
  %v534 = vpop.f32.mrf.mxu0
  %v535 = vadd.f32 0.0, %v534
  %v536 = vpop.f32.mrf.mxu0
  %537 = vdwg.mxu0
  %v538 = vadd.f32 %v453, %v532
  %v539 = vadd.f32 %v456, %v535
  %v540 = vld [vmem:[%s2] sm:$0x1]
  %v542 = vlaneseq
  %v543 = vshrl.u32 %v542, 7
  %v544 = vsub.s32 0, %v543
  %v545 = vrot.slane %v540, %v544
  %v547 = vadd.f32 %v538, %v545
  %v548 = vadd.f32 %v539, %v545
  %s549 = scalar_lea.vmem %s3, 16
  %550 = vst [vmem:[%s549] sm:$0xff] %v547
  %551 = vst [vmem:[%s549 + $0x8] sm:$0xff] %v548
  // Predicated region
  $region14: #{conv2d_pallas.1} parent=0 // pred_check
    _
  $region15: #{conv2d_pallas.1} parent=0 // pred_check_branch
    %553 = sbr.rel (0) target = $region17
  $region16: #{conv2d_pallas.1} parent=0 // pred_region
    _
  $region17: #{conv2d_pallas.1} parent=0 // pred_fallthru
    _
  // Predicated region
  $region18: #{conv2d_pallas.1} parent=0 // pred_check
    _
  $region19: #{conv2d_pallas.1} parent=0 // pred_check_branch
    %555 = sbr.rel (0) target = $region21
  $region20: #{conv2d_pallas.1} parent=0 // pred_region
    _
  $region21: #{conv2d_pallas.1} parent=0 // pred_fallthru
    _

</llo_original>
